<compile_context>
chip_gen: v5e
topology: v5e:2x2
jax: 0.10.0
libtpu: 0.0.40
codegen_flags: <defaults>
</compile_context>

<pallas_src>
import jax
import jax.numpy as jnp
from jax.experimental import pallas as pl
from jax.experimental.pallas import tpu as pltpu

_SUBLANE = 8
_LANE = 128


def _round_up(n, m):
    return ((n + m - 1) // m) * m


def _stacked_lstm_kernel(x_ref, h0_ref, c0_ref, w_ref, b_ref,
                         h1_ref, c1_ref, xh_scr):
    """One grid step == one LSTMCell layer. State chains through VMEM scratch."""
    layer = pl.program_id(0)
    d_in = x_ref.shape[1]        # padded input-feature width (lane aligned)
    hid = h1_ref.shape[1]        # padded hidden width (lane aligned)

    # Layer 0: seed the "input" half of the fused activation buffer with x.
    @pl.when(layer == 0)
    def _():
        xh_scr[:, :d_in] = x_ref[...]

    # Every layer: load this layer's recurrent state into the "h" half.
    xh_scr[:, d_in:] = h0_ref[...]

    # Single fused matmul: [x ; h] @ [W_ih^T ; W_hh^T]  (+ combined bias).
    gates = (
        jnp.dot(xh_scr[...], w_ref[...], preferred_element_type=jnp.float32)
        + b_ref[...]
    )

    # Lane-aligned gate slots (each `hid` lanes wide), PyTorch order [i, f, g, o].
    i_g = jax.nn.sigmoid(gates[:, 0 * hid:1 * hid])
    f_g = jax.nn.sigmoid(gates[:, 1 * hid:2 * hid])
    g_g = jnp.tanh(gates[:, 2 * hid:3 * hid])
    o_g = jax.nn.sigmoid(gates[:, 3 * hid:4 * hid])

    c_new = f_g * c0_ref[...] + i_g * g_g
    h_new = o_g * jnp.tanh(c_new)

    h1_ref[...] = h_new
    c1_ref[...] = c_new

    # Chain h into the next layer's input (dropout is identity at inference).
    # Stale padded input columns beyond `hid` multiply zero weight rows in
    # deeper layers, so they don't need clearing.
    @pl.when(layer + 1 < pl.num_programs(0))
    def _():
        xh_scr[:, :hid] = h_new


def init_stacked_lstm_params(key, num_layers, input_size, hidden_size):
    """Per-layer params in PyTorch nn.LSTMCell layout, uniform(-k, k)."""
    params = []
    k = 1.0 / float(hidden_size) ** 0.5
    in_dim = input_size
    for _ in range(num_layers):
        key, k1, k2, k3, k4 = jax.random.split(key, 5)
        params.append({
            "w_ih": jax.random.uniform(k1, (4 * hidden_size, in_dim), jnp.float32, -k, k),
            "w_hh": jax.random.uniform(k2, (4 * hidden_size, hidden_size), jnp.float32, -k, k),
            "b_ih": jax.random.uniform(k3, (4 * hidden_size,), jnp.float32, -k, k),
            "b_hh": jax.random.uniform(k4, (4 * hidden_size,), jnp.float32, -k, k),
        })
        in_dim = hidden_size
    return params


def pack_stacked_lstm_params(params, input_size, hidden_size):
    """Pack per-layer PyTorch-layout params into padded, stacked kernel arrays.

    Returns:
      w: (L, Din + Hp, 4*Hp) f32  rows [0:in_dim]    = W_ih^T
                                  rows [Din:Din+H]   = W_hh^T
                                  gate g -> lane-aligned columns [g*Hp, g*Hp+H)
      b: (L, 1, 4*Hp)       f32  b_ih + b_hh in the same gate slots.
    """
    num_layers = len(params)
    hp = _round_up(hidden_size, _LANE)
    d_in = max(_round_up(input_size, _LANE), hp)
    w = jnp.zeros((num_layers, d_in + hp, 4 * hp), jnp.float32)
    b = jnp.zeros((num_layers, 1, 4 * hp), jnp.float32)
    for l, p in enumerate(params):
        in_dim = p["w_ih"].shape[1]
        for g in range(4):
            rows = slice(g * hidden_size, (g + 1) * hidden_size)
            cols = slice(g * hp, g * hp + hidden_size)
            w = w.at[l, :in_dim, cols].set(p["w_ih"][rows, :].T)
            w = w.at[l, d_in:d_in + hidden_size, cols].set(p["w_hh"][rows, :].T)
            b = b.at[l, 0, cols].set(p["b_ih"][rows] + p["b_hh"][rows])
    return w, b


@jax.jit
def stacked_lstm_forward(x, h_0, c_0, w_packed, b_packed):
    """StackedLSTM.forward: fused per-layer LSTMCell chain in one pallas_call."""
    num_layers, batch, hidden_size = h_0.shape
    input_size = x.shape[1]
    hp = w_packed.shape[2] // 4
    d_in = w_packed.shape[1] - hp
    bp = _round_up(batch, _SUBLANE)

    # Pad activations/state to (8, 128)-aligned tiles (zeros in the pad region
    # keep padded lanes/rows exactly zero through the recurrence).
    x_p = jnp.zeros((bp, d_in), jnp.float32).at[:batch, :input_size].set(x)
    h0_p = jnp.zeros((num_layers, bp, hp), jnp.float32).at[:, :batch, :hidden_size].set(h_0)
    c0_p = jnp.zeros((num_layers, bp, hp), jnp.float32).at[:, :batch, :hidden_size].set(c_0)

    grid_spec = pltpu.PrefetchScalarGridSpec(
        num_scalar_prefetch=0,
        grid=(num_layers,),
        in_specs=[
            pl.BlockSpec((bp, d_in), lambda l: (0, 0)),                     # x (fetched once)
            pl.BlockSpec((None, bp, hp), lambda l: (l, 0, 0)),              # h_0[l]
            pl.BlockSpec((None, bp, hp), lambda l: (l, 0, 0)),              # c_0[l]
            pl.BlockSpec((None, d_in + hp, 4 * hp), lambda l: (l, 0, 0)),   # [W_ih^T; W_hh^T][l]
            pl.BlockSpec((None, 1, 4 * hp), lambda l: (l, 0, 0)),           # bias[l]
        ],
        out_specs=(
            pl.BlockSpec((None, bp, hp), lambda l: (l, 0, 0)),              # h_1[l]
            pl.BlockSpec((None, bp, hp), lambda l: (l, 0, 0)),              # c_1[l]
        ),
        scratch_shapes=[pltpu.VMEM((bp, d_in + hp), jnp.float32)],          # [x ; h] buffer
    )

    h1_p, c1_p = pl.pallas_call(
        _stacked_lstm_kernel,
        out_shape=(
            jax.ShapeDtypeStruct((num_layers, bp, hp), jnp.float32),
            jax.ShapeDtypeStruct((num_layers, bp, hp), jnp.float32),
        ),
        grid_spec=grid_spec,
        compiler_params=pltpu.CompilerParams(
            dimension_semantics=("arbitrary",)),   # layers are sequentially dependent
    )(x_p, h0_p, c0_p, w_packed, b_packed)

    h_1 = h1_p[:, :batch, :hidden_size]
    c_1 = c1_p[:, :batch, :hidden_size]
    return h_1[-1], (h_1, c_1)


def _reference_forward(x, h_0, c_0, params):
    """Pure-JAX reference (PyTorch LSTMCell semantics) for correctness check."""
    inp = x
    h_1, c_1 = [], []
    hid = h_0.shape[-1]
    for i, p in enumerate(params):
        gates = inp @ p["w_ih"].T + h_0[i] @ p["w_hh"].T + p["b_ih"] + p["b_hh"]
        i_g = jax.nn.sigmoid(gates[:, 0 * hid:1 * hid])
        f_g = jax.nn.sigmoid(gates[:, 1 * hid:2 * hid])
        g_g = jnp.tanh(gates[:, 2 * hid:3 * hid])
        o_g = jax.nn.sigmoid(gates[:, 3 * hid:4 * hid])
        c_i = f_g * c_0[i] + i_g * g_g
        h_i = o_g * jnp.tanh(c_i)
        inp = h_i
        h_1.append(h_i)
        c_1.append(c_i)
    return inp, (jnp.stack(h_1), jnp.stack(c_1))


if __name__ == "__main__":
    num_layers = 3
    batch = 2
    input_size = 16
    hidden_size = 32

    key = jax.random.PRNGKey(0)
    kx, kh, kc, kp = jax.random.split(key, 4)

    x = jax.random.normal(kx, (batch, input_size), jnp.float32)
    h_0 = jax.random.normal(kh, (num_layers, batch, hidden_size), jnp.float32)
    c_0 = jax.random.normal(kc, (num_layers, batch, hidden_size), jnp.float32)

    params = init_stacked_lstm_params(kp, num_layers, input_size, hidden_size)
    w_packed, b_packed = pack_stacked_lstm_params(params, input_size, hidden_size)

    out, (h_1, c_1) = stacked_lstm_forward(x, h_0, c_0, w_packed, b_packed)
    out = jax.block_until_ready(out)
    h_1 = jax.block_until_ready(h_1)
    c_1 = jax.block_until_ready(c_1)

    # Sanity-check against the pure-JAX reference.
    ref_out, (ref_h, ref_c) = _reference_forward(x, h_0, c_0, params)
    assert out.shape == (batch, hidden_size)
    assert h_1.shape == (num_layers, batch, hidden_size)
    assert c_1.shape == (num_layers, batch, hidden_size)
    assert jnp.allclose(out, ref_out, atol=1e-5, rtol=1e-5)
    assert jnp.allclose(h_1, ref_h, atol=1e-5, rtol=1e-5)
    assert jnp.allclose(c_1, ref_c, atol=1e-5, rtol=1e-5)

    print("KERNEL_OK")
</pallas_src>

<mosaic_0001>
module attributes {stable_mosaic.version = 11 : i64} {
  func.func @_stacked_lstm_kernel(%arg0: i32, %arg1: memref<8x128xf32, #tpu.memory_space<vmem>>, %arg2: memref<1x8x128xf32, #tpu.memory_space<vmem>>, %arg3: memref<1x8x128xf32, #tpu.memory_space<vmem>>, %arg4: memref<1x256x512xf32, #tpu.memory_space<vmem>>, %arg5: memref<1x1x512xf32, #tpu.memory_space<vmem>>, %arg6: memref<1x8x128xf32, #tpu.memory_space<vmem>>, %arg7: memref<1x8x128xf32, #tpu.memory_space<vmem>>, %arg8: memref<8x256xf32, #tpu.memory_space<vmem>>) attributes {dimension_semantics = [#tpu.dimension_semantics<arbitrary>], iteration_bounds = array<i64: 3>, scalar_prefetch = 0 : i64, scratch_operands = 1 : i64, tpu.core_type = #tpu.core_type<tc>, window_params = [{pipeline_mode = #tpu.pipeline_mode<synchronous>, transform_indices = @transform_0, window_bounds = array<i64: 8, 128>}, {transform_indices = @transform_1, window_bounds = array<i64: 1, 8, 128>}, {transform_indices = @transform_2, window_bounds = array<i64: 1, 8, 128>}, {transform_indices = @transform_3, window_bounds = array<i64: 1, 256, 512>}, {transform_indices = @transform_4, window_bounds = array<i64: 1, 1, 512>}, {transform_indices = @transform_5, window_bounds = array<i64: 1, 8, 128>}, {transform_indices = @transform_6, window_bounds = array<i64: 1, 8, 128>}]} {
    %c0_i32 = arith.constant 0 : i32
    %0 = arith.cmpi eq, %arg0, %c0_i32 : i32
    %1 = arith.extui %0 : i1 to i32
    %c0_i32_0 = arith.constant 0 : i32
    %2 = arith.cmpi ne, %1, %c0_i32_0 : i32
    scf.if %2 {
      %c0_25 = arith.constant 0 : index
      %c0_26 = arith.constant 0 : index
      %51 = vector.load %arg1[%c0_25, %c0_26] : memref<8x128xf32, #tpu.memory_space<vmem>>, vector<8x128xf32>
      %c0_27 = arith.constant 0 : index
      %c0_28 = arith.constant 0 : index
      %52 = vector.load %arg8[%c0_27, %c0_28] : memref<8x256xf32, #tpu.memory_space<vmem>>, vector<8x128xf32>
      tpu.vector_store %arg8[%c0_27, %c0_28], %51 {strides = array<i32>} : memref<8x256xf32, #tpu.memory_space<vmem>>, vector<8x128xf32>,
    } else {
    }
    %c0 = arith.constant 0 : index
    %c0_1 = arith.constant 0 : index
    %c0_2 = arith.constant 0 : index
    %3 = vector.load %arg2[%c0, %c0_1, %c0_2] : memref<1x8x128xf32, #tpu.memory_space<vmem>>, vector<1x8x128xf32>
    %4 = vector.shape_cast %3 : vector<1x8x128xf32> to vector<8x128xf32>
    %c0_3 = arith.constant 0 : index
    %c128 = arith.constant 128 : index
    %5 = vector.load %arg8[%c0_3, %c128] : memref<8x256xf32, #tpu.memory_space<vmem>>, vector<8x128xf32>
    tpu.vector_store %arg8[%c0_3, %c128], %4 {strides = array<i32>} : memref<8x256xf32, #tpu.memory_space<vmem>>, vector<8x128xf32>,
    %c0_4 = arith.constant 0 : index
    %c0_5 = arith.constant 0 : index
    %6 = vector.load %arg8[%c0_4, %c0_5] : memref<8x256xf32, #tpu.memory_space<vmem>>, vector<8x256xf32>
    %c0_6 = arith.constant 0 : index
    %c0_7 = arith.constant 0 : index
    %c0_8 = arith.constant 0 : index
    %7 = vector.load %arg4[%c0_6, %c0_7, %c0_8] : memref<1x256x512xf32, #tpu.memory_space<vmem>>, vector<1x256x512xf32>
    %8 = vector.shape_cast %7 : vector<1x256x512xf32> to vector<256x512xf32>
    %cst = arith.constant dense<0.000000e+00> : vector<8x512xf32>
    %9 = tpu.matmul %6, %8, %cst {dimension_numbers = #tpu.dot_dimension_numbers<[1], [0], [0], [1], [0, 0, 1, 1], [], []>} : vector<8x256xf32>, vector<256x512xf32>, vector<8x512xf32> -> vector<8x512xf32>
    %c0_9 = arith.constant 0 : index
    %c0_10 = arith.constant 0 : index
    %c0_11 = arith.constant 0 : index
    %10 = vector.load %arg5[%c0_9, %c0_10, %c0_11] : memref<1x1x512xf32, #tpu.memory_space<vmem>>, vector<1x1x512xf32>
    %11 = vector.shape_cast %10 : vector<1x1x512xf32> to vector<1x512xf32>
    %12 = vector.broadcast %11 : vector<1x512xf32> to vector<8x512xf32>
    %13 = arith.addf %9, %12 : vector<8x512xf32>
    %14 = vector.extract_strided_slice %13 {offsets = [0, 0], sizes = [8, 128], strides = [1, 1]} : vector<8x512xf32> to vector<8x128xf32>
    %15 = arith.negf %14 : vector<8x128xf32>
    %16 = math.exp %15 : vector<8x128xf32>
    %cst_12 = arith.constant 1.000000e+00 : f32
    %17 = vector.broadcast %cst_12 : f32 to vector<8x128xf32>
    %18 = arith.addf %17, %16 : vector<8x128xf32>
    %19 = arith.divf %17, %18 : vector<8x128xf32>
    %20 = vector.extract_strided_slice %13 {offsets = [0, 128], sizes = [8, 128], strides = [1, 1]} : vector<8x512xf32> to vector<8x128xf32>
    %21 = arith.negf %20 : vector<8x128xf32>
    %22 = math.exp %21 : vector<8x128xf32>
    %cst_13 = arith.constant 1.000000e+00 : f32
    %23 = vector.broadcast %cst_13 : f32 to vector<8x128xf32>
    %24 = arith.addf %23, %22 : vector<8x128xf32>
    %25 = arith.divf %23, %24 : vector<8x128xf32>
    %26 = vector.extract_strided_slice %13 {offsets = [0, 256], sizes = [8, 128], strides = [1, 1]} : vector<8x512xf32> to vector<8x128xf32>
    %27 = math.tanh %26 : vector<8x128xf32>
    %28 = vector.extract_strided_slice %13 {offsets = [0, 384], sizes = [8, 128], strides = [1, 1]} : vector<8x512xf32> to vector<8x128xf32>
    %29 = arith.negf %28 : vector<8x128xf32>
    %30 = math.exp %29 : vector<8x128xf32>
    %cst_14 = arith.constant 1.000000e+00 : f32
    %31 = vector.broadcast %cst_14 : f32 to vector<8x128xf32>
    %32 = arith.addf %31, %30 : vector<8x128xf32>
    %33 = arith.divf %31, %32 : vector<8x128xf32>
    %c0_15 = arith.constant 0 : index
    %c0_16 = arith.constant 0 : index
    %c0_17 = arith.constant 0 : index
    %34 = vector.load %arg3[%c0_15, %c0_16, %c0_17] : memref<1x8x128xf32, #tpu.memory_space<vmem>>, vector<1x8x128xf32>
    %35 = vector.shape_cast %34 : vector<1x8x128xf32> to vector<8x128xf32>
    %36 = arith.mulf %25, %35 : vector<8x128xf32>
    %37 = arith.mulf %19, %27 : vector<8x128xf32>
    %38 = arith.addf %36, %37 : vector<8x128xf32>
    %39 = math.tanh %38 : vector<8x128xf32>
    %40 = arith.mulf %33, %39 : vector<8x128xf32>
    %c0_18 = arith.constant 0 : index
    %c0_19 = arith.constant 0 : index
    %c0_20 = arith.constant 0 : index
    %41 = vector.load %arg6[%c0_18, %c0_19, %c0_20] : memref<1x8x128xf32, #tpu.memory_space<vmem>>, vector<1x8x128xf32>
    %42 = vector.shape_cast %41 : vector<1x8x128xf32> to vector<8x128xf32>
    %43 = vector.shape_cast %40 : vector<8x128xf32> to vector<1x8x128xf32>
    tpu.vector_store %arg6[%c0_18, %c0_19, %c0_20], %43 {strides = array<i32>} : memref<1x8x128xf32, #tpu.memory_space<vmem>>, vector<1x8x128xf32>,
    %c0_21 = arith.constant 0 : index
    %c0_22 = arith.constant 0 : index
    %c0_23 = arith.constant 0 : index
    %44 = vector.load %arg7[%c0_21, %c0_22, %c0_23] : memref<1x8x128xf32, #tpu.memory_space<vmem>>, vector<1x8x128xf32>
    %45 = vector.shape_cast %44 : vector<1x8x128xf32> to vector<8x128xf32>
    %46 = vector.shape_cast %38 : vector<8x128xf32> to vector<1x8x128xf32>
    tpu.vector_store %arg7[%c0_21, %c0_22, %c0_23], %46 {strides = array<i32>} : memref<1x8x128xf32, #tpu.memory_space<vmem>>, vector<1x8x128xf32>,
    %c1_i32 = arith.constant 1 : i32
    %47 = arith.addi %arg0, %c1_i32 : i32
    %c3_i32 = arith.constant 3 : i32
    %48 = arith.cmpi slt, %47, %c3_i32 : i32
    %49 = arith.extui %48 : i1 to i32
    %c0_i32_24 = arith.constant 0 : i32
    %50 = arith.cmpi ne, %49, %c0_i32_24 : i32
    scf.if %50 {
      %c0_25 = arith.constant 0 : index
      %c0_26 = arith.constant 0 : index
      %51 = vector.load %arg8[%c0_25, %c0_26] : memref<8x256xf32, #tpu.memory_space<vmem>>, vector<8x128xf32>
      tpu.vector_store %arg8[%c0_25, %c0_26], %40 {strides = array<i32>} : memref<8x256xf32, #tpu.memory_space<vmem>>, vector<8x128xf32>,
    } else {
    }
    return
  }
  func.func @transform_0(%arg0: i32) -> (i32, i32) {
    %c0_i32 = arith.constant 0 : i32
    %c0_i32_0 = arith.constant 0 : i32
    %c0_i32_1 = arith.constant 0 : i32
    return %c0_i32, %c0_i32_0 : i32, i32
  }
  func.func @transform_1(%arg0: i32) -> (i32, i32, i32) {
    %c0_i32 = arith.constant 0 : i32
    %c0_i32_0 = arith.constant 0 : i32
    %c0_i32_1 = arith.constant 0 : i32
    return %arg0, %c0_i32, %c0_i32_0 : i32, i32, i32
  }
  func.func @transform_2(%arg0: i32) -> (i32, i32, i32) {
    %c0_i32 = arith.constant 0 : i32
    %c0_i32_0 = arith.constant 0 : i32
    %c0_i32_1 = arith.constant 0 : i32
    return %arg0, %c0_i32, %c0_i32_0 : i32, i32, i32
  }
  func.func @transform_3(%arg0: i32) -> (i32, i32, i32) {
    %c0_i32 = arith.constant 0 : i32
    %c0_i32_0 = arith.constant 0 : i32
    %c0_i32_1 = arith.constant 0 : i32
    return %arg0, %c0_i32, %c0_i32_0 : i32, i32, i32
  }
  func.func @transform_4(%arg0: i32) -> (i32, i32, i32) {
    %c0_i32 = arith.constant 0 : i32
    %c0_i32_0 = arith.constant 0 : i32
    %c0_i32_1 = arith.constant 0 : i32
    return %arg0, %c0_i32, %c0_i32_0 : i32, i32, i32
  }
  func.func @transform_5(%arg0: i32) -> (i32, i32, i32) {
    %c0_i32 = arith.constant 0 : i32
    %c0_i32_0 = arith.constant 0 : i32
    %c0_i32_1 = arith.constant 0 : i32
    return %arg0, %c0_i32, %c0_i32_0 : i32, i32, i32
  }
  func.func @transform_6(%arg0: i32) -> (i32, i32, i32) {
    %c0_i32 = arith.constant 0 : i32
    %c0_i32_0 = arith.constant 0 : i32
    %c0_i32_1 = arith.constant 0 : i32
    return %arg0, %c0_i32, %c0_i32_0 : i32, i32, i32
  }
}

</mosaic_0001>

<llo_original>
// kernel: stacked_lstm_forward.1
$region0: #{stacked_lstm_forward.1}
  #allocation0 [shape = 'u32[]', space=smem, size = 0x4, offset = 0x4, fixed_abs, tag = 'smem constant byte address 0x4 - core index']
  #allocation1 [shape = 'u32[72,128]{1,0:T(1,128)}', space=vmem, size = 0x9000, scoped, tag = 'internal scratch']
  #allocation2 [shape = 'f32[8,256]{1,0:T(8,128)}', space=vmem, size = 0x2000, scoped, tag = 'scratch operand']
  %s0 = inlined_call_operand.vmem [shape: f32[8,128], index: 0, kind: input, shape index: {}]
  %s1 = inlined_call_operand.vmem [shape: f32[3,8,128], index: 1, kind: input, shape index: {}]
  %s2 = inlined_call_operand.vmem [shape: f32[3,8,128], index: 2, kind: input, shape index: {}]
  %s3 = inlined_call_operand.hbm [shape: f32[3,256,512], index: 3, kind: input, shape index: {}]
  %s4 = inlined_call_operand.hbm [shape: f32[3,1,512], index: 4, kind: input, shape index: {}]
  %s5 = inlined_call_operand.vmem [shape: f32[3,8,128], index: 5, kind: output, shape index: {0}]
  %s6 = inlined_call_operand.vmem [shape: f32[3,8,128], index: 6, kind: output, shape index: {1}]
  %7 = xla_tuple %s5, %s6
  %s8 = sld [smem:[#allocation0]]
  $region77: #{stacked_lstm_forward.1} parent=0
    _
  %s10 = ssub.s32 1, %s8
  %s11 = scalar_select 0, %s10, %s8
  $region1: #{stacked_lstm_forward.1} parent=0
    #allocation3 [shape = 'u8[1048576]{0}', space=vmem, size = 0x100000, scoped, tag = 'input window, operand 3']
    #allocation4 [shape = 's32[2]{0}', space=sflag, size = 0x8, scoped, tag = 'scoped memory for stacked_lstm_forward.1']
    #allocation5 [shape = 'u8[4096]{0}', space=vmem, size = 0x1000, scoped, tag = 'input window, operand 4']
    #allocation6 [shape = 's32[2]{0}', space=sflag, size = 0x8, scoped, tag = 'scoped memory for stacked_lstm_forward.1']
    %12 = vsyncpa [#allocation4], 0
    %s13 = scalar_lea.sflag [#allocation4], 1
    %14 = vsyncpa %s13, 0
    %15 = vsyncpa [#allocation6], 0
    %s16 = scalar_lea.sflag [#allocation6], 1
    %17 = vsyncpa %s16, 0
    loop: start=0, step=1, limit=5
    $region2: #{stacked_lstm_forward.1} parent=1 // loop_pre_header
      _
    $region3: #{stacked_lstm_forward.1} parent=1 // loop_header
      %s19 = sphi 0, %s23
      %p20 = scmp.ge.s32.totalorder %s19, 5
      %s27 = sphi 0, %s27
      %s29 = sphi 0, %s27
      %s30 = sphi 0, %s29
      %s44 = sphi 0, %s30
      %s50 = sphi 0, %s52
      %s53 = sphi 0, %s50
      %s54 = sphi 0, %s53
      %s70 = sphi 0, %s54
      %s76 = sphi 0, %s78
      %s79 = sphi 0, %s76
      %s80 = sphi 0, %s79
      %s96 = sphi 0, %s80
      %s102 = sphi 0, %s104
      %s105 = sphi 0, %s102
      %s106 = sphi 0, %s105
      %s122 = sphi 0, %s106
      %s128 = sphi 0, %s130
      %s131 = sphi 0, %s128
      %s132 = sphi 0, %s131
      %s148 = sphi 0, %s132
      %s154 = sphi 0, %s156
      %s157 = sphi 0, %s154
      %s158 = sphi 0, %s157
      %s174 = sphi 0, %s158
      %s180 = sphi 0, %s182
      %s183 = sphi 0, %s180
      %s184 = sphi 0, %s183
      %s200 = sphi 0, %s184
    $region4: #{stacked_lstm_forward.1} parent=1 // loop_header_branch
      %22 = sbr.rel (%p20) target = $region8
    $region5: #{stacked_lstm_forward.1} parent=1 // loop_body
      %s24 = ssub.s32 %s19, 1
      %s25 = ssub.s32 %s19, 2
      %s26 = sadd.s32 %s19, 1
      %s28 = sadd.s32 %s27, 1
      %p31 = scmp.eq.s32.totalorder %s19, 2
      %p32 = scmp.ne.s32.totalorder %s27, %s29
      %p33 = scmp.eq.s32.totalorder %s19, 0
      %p34 = por %p32, %p33
      %p35 = scmp.ne.s32.totalorder %s27, %s29
      %p36 = scmp.eq.s32.totalorder %s24, 2
      %p37 = por %p35, %p36
      %p38 = scmp.ne.s32.totalorder %s29, %s30
      %p39 = scmp.eq.s32.totalorder %s24, 0
      %p40 = por %p38, %p39
      %p41 = scmp.ne.s32.totalorder %s29, %s30
      %p42 = scmp.eq.s32.totalorder %s25, 2
      %p43 = por %p41, %p42
      %p45 = scmp.ne.s32.totalorder %s30, %s44
      %p46 = scmp.eq.s32.totalorder %s25, 0
      %p47 = por %p45, %p46
      %s48 = ssub.s32 %s19, %s26
      %p49 = scmp.eq.s32.totalorder %s48, 0
      %s51 = sadd.s32 %s50, 1
      %s52 = scalar_select %p49, %s50, %s51
      %p55 = pneg %p49
      %p56 = scmp.eq.s32.totalorder %s19, 2
      %p57 = por %p55, %p56
      %p58 = scmp.ne.s32.totalorder %s50, %s53
      %p59 = scmp.eq.s32.totalorder %s19, 0
      %p60 = por %p58, %p59
      %p61 = scmp.ne.s32.totalorder %s50, %s53
      %p62 = scmp.eq.s32.totalorder %s24, 2
      %p63 = por %p61, %p62
      %p64 = scmp.ne.s32.totalorder %s53, %s54
      %p65 = scmp.eq.s32.totalorder %s24, 0
      %p66 = por %p64, %p65
      %p67 = scmp.ne.s32.totalorder %s53, %s54
      %p68 = scmp.eq.s32.totalorder %s25, 2
      %p69 = por %p67, %p68
      %p71 = scmp.ne.s32.totalorder %s54, %s70
      %p72 = scmp.eq.s32.totalorder %s25, 0
      %p73 = por %p71, %p72
      %s74 = ssub.s32 %s19, %s26
      %p75 = scmp.eq.s32.totalorder %s74, 0
      %s77 = sadd.s32 %s76, 1
      %s78 = scalar_select %p75, %s76, %s77
      %p81 = pneg %p75
      %p82 = scmp.eq.s32.totalorder %s19, 2
      %p83 = por %p81, %p82
      %p84 = scmp.ne.s32.totalorder %s76, %s79
      %p85 = scmp.eq.s32.totalorder %s19, 0
      %p86 = por %p84, %p85
      %p87 = scmp.ne.s32.totalorder %s76, %s79
      %p88 = scmp.eq.s32.totalorder %s24, 2
      %p89 = por %p87, %p88
      %p90 = scmp.ne.s32.totalorder %s79, %s80
      %p91 = scmp.eq.s32.totalorder %s24, 0
      %p92 = por %p90, %p91
      %p93 = scmp.ne.s32.totalorder %s79, %s80
      %p94 = scmp.eq.s32.totalorder %s25, 2
      %p95 = por %p93, %p94
      %p97 = scmp.ne.s32.totalorder %s80, %s96
      %p98 = scmp.eq.s32.totalorder %s25, 0
      %p99 = por %p97, %p98
      %s100 = ssub.s32 %s19, %s26
      %p101 = scmp.eq.s32.totalorder %s100, 0
      %s103 = sadd.s32 %s102, 1
      %s104 = scalar_select %p101, %s102, %s103
      %p107 = pneg %p101
      %p108 = scmp.eq.s32.totalorder %s19, 2
      %p109 = por %p107, %p108
      %p110 = scmp.ne.s32.totalorder %s102, %s105
      %p111 = scmp.eq.s32.totalorder %s19, 0
      %p112 = por %p110, %p111
      %p113 = scmp.ne.s32.totalorder %s102, %s105
      %p114 = scmp.eq.s32.totalorder %s24, 2
      %p115 = por %p113, %p114
      %p116 = scmp.ne.s32.totalorder %s105, %s106
      %p117 = scmp.eq.s32.totalorder %s24, 0
      %p118 = por %p116, %p117
      %p119 = scmp.ne.s32.totalorder %s105, %s106
      %p120 = scmp.eq.s32.totalorder %s25, 2
      %p121 = por %p119, %p120
      %p123 = scmp.ne.s32.totalorder %s106, %s122
      %p124 = scmp.eq.s32.totalorder %s25, 0
      %p125 = por %p123, %p124
      %s126 = ssub.s32 %s19, %s26
      %p127 = scmp.eq.s32.totalorder %s126, 0
      %s129 = sadd.s32 %s128, 1
      %s130 = scalar_select %p127, %s128, %s129
      %p133 = pneg %p127
      %p134 = scmp.eq.s32.totalorder %s19, 2
      %p135 = por %p133, %p134
      %p136 = scmp.ne.s32.totalorder %s128, %s131
      %p137 = scmp.eq.s32.totalorder %s19, 0
      %p138 = por %p136, %p137
      %p139 = scmp.ne.s32.totalorder %s128, %s131
      %p140 = scmp.eq.s32.totalorder %s24, 2
      %p141 = por %p139, %p140
      %p142 = scmp.ne.s32.totalorder %s131, %s132
      %p143 = scmp.eq.s32.totalorder %s24, 0
      %p144 = por %p142, %p143
      %p145 = scmp.ne.s32.totalorder %s131, %s132
      %p146 = scmp.eq.s32.totalorder %s25, 2
      %p147 = por %p145, %p146
      %p149 = scmp.ne.s32.totalorder %s132, %s148
      %p150 = scmp.eq.s32.totalorder %s25, 0
      %p151 = por %p149, %p150
      %s152 = ssub.s32 %s19, %s26
      %p153 = scmp.eq.s32.totalorder %s152, 0
      %s155 = sadd.s32 %s154, 1
      %s156 = scalar_select %p153, %s154, %s155
      %p159 = pneg %p153
      %p160 = scmp.eq.s32.totalorder %s19, 2
      %p161 = por %p159, %p160
      %p162 = scmp.ne.s32.totalorder %s154, %s157
      %p163 = scmp.eq.s32.totalorder %s19, 0
      %p164 = por %p162, %p163
      %p165 = scmp.ne.s32.totalorder %s154, %s157
      %p166 = scmp.eq.s32.totalorder %s24, 2
      %p167 = por %p165, %p166
      %p168 = scmp.ne.s32.totalorder %s157, %s158
      %p169 = scmp.eq.s32.totalorder %s24, 0
      %p170 = por %p168, %p169
      %p171 = scmp.ne.s32.totalorder %s157, %s158
      %p172 = scmp.eq.s32.totalorder %s25, 2
      %p173 = por %p171, %p172
      %p175 = scmp.ne.s32.totalorder %s158, %s174
      %p176 = scmp.eq.s32.totalorder %s25, 0
      %p177 = por %p175, %p176
      %s178 = ssub.s32 %s19, %s26
      %p179 = scmp.eq.s32.totalorder %s178, 0
      %s181 = sadd.s32 %s180, 1
      %s182 = scalar_select %p179, %s180, %s181
      %p185 = pneg %p179
      %p186 = scmp.eq.s32.totalorder %s19, 2
      %p187 = por %p185, %p186
      %p188 = scmp.ne.s32.totalorder %s180, %s183
      %p189 = scmp.eq.s32.totalorder %s19, 0
      %p190 = por %p188, %p189
      %p191 = scmp.ne.s32.totalorder %s180, %s183
      %p192 = scmp.eq.s32.totalorder %s24, 2
      %p193 = por %p191, %p192
      %p194 = scmp.ne.s32.totalorder %s183, %s184
      %p195 = scmp.eq.s32.totalorder %s24, 0
      %p196 = por %p194, %p195
      %p197 = scmp.ne.s32.totalorder %s183, %s184
      %p198 = scmp.eq.s32.totalorder %s25, 2
      %p199 = por %p197, %p198
      %p201 = scmp.ne.s32.totalorder %s184, %s200
      %p202 = scmp.eq.s32.totalorder %s25, 0
      %p203 = por %p201, %p202
      %p204 = scmp.le.s32.totalorder 1, %s19
      %p205 = scmp.lt.s32.totalorder %s19, 4
      %p206 = pnand %p204, %p205
      %p207 = pneg %p206
      // Predicated region
      $region9: #{stacked_lstm_forward.1} parent=5 // pred_check
        _
      $region10: #{stacked_lstm_forward.1} parent=5 // pred_check_branch
        %209 = sbr.rel (%p206) target = $region12
      $region11: #{stacked_lstm_forward.1} parent=5 // pred_region
        %s210 = ssub.s32 %s19, 1
        // Predicated region
        $region13: #{stacked_lstm_forward.1} parent=11 // pred_check
          %p211 = pneg %p40
        $region14: #{stacked_lstm_forward.1} parent=11 // pred_check_branch
          %213 = sbr.rel (%p211) target = $region16
        $region15: #{stacked_lstm_forward.1} parent=11 // pred_region
          _
        $region16: #{stacked_lstm_forward.1} parent=11 // pred_fallthru
          _
      $region12: #{stacked_lstm_forward.1} parent=5 // pred_fallthru
        _
      %p214 = scmp.lt.s32.totalorder %s19, 3
      // Predicated region
      $region17: #{stacked_lstm_forward.1} parent=5 // pred_check
        %p215 = pneg %p214
      $region18: #{stacked_lstm_forward.1} parent=5 // pred_check_branch
        %217 = sbr.rel (%p215) target = $region20
      $region19: #{stacked_lstm_forward.1} parent=5 // pred_region
        // Predicated region
        $region21: #{stacked_lstm_forward.1} parent=19 // pred_check
          %p218 = pneg %p60
        $region22: #{stacked_lstm_forward.1} parent=19 // pred_check_branch
          %220 = sbr.rel (%p218) target = $region24
        $region23: #{stacked_lstm_forward.1} parent=19 // pred_region
          %p221 = scmp.lt.s32.totalorder %s19, 2
          %s222 = scalar_select %p221, %s19, 2
          %s223 = smul.addr %s222, 8
          %s224 = scalar_lea.vmem %s1, %s223
        $region24: #{stacked_lstm_forward.1} parent=19 // pred_fallthru
          _
        // Predicated region
        $region25: #{stacked_lstm_forward.1} parent=19 // pred_check
          %p225 = pneg %p86
        $region26: #{stacked_lstm_forward.1} parent=19 // pred_check_branch
          %227 = sbr.rel (%p225) target = $region28
        $region27: #{stacked_lstm_forward.1} parent=19 // pred_region
          %p228 = scmp.lt.s32.totalorder %s19, 2
          %s229 = scalar_select %p228, %s19, 2
          %s230 = smul.addr %s229, 8
          %s231 = scalar_lea.vmem %s2, %s230
        $region28: #{stacked_lstm_forward.1} parent=19 // pred_fallthru
          _
        // Predicated region
        $region29: #{stacked_lstm_forward.1} parent=19 // pred_check
          %p232 = pneg %p112
        $region30: #{stacked_lstm_forward.1} parent=19 // pred_check_branch
          %234 = sbr.rel (%p232) target = $region32
        $region31: #{stacked_lstm_forward.1} parent=19 // pred_region
          %s235 = sand.u32 %s102, 1
          %s236 = scalar_lea.sflag [#allocation4], %s235
          %s237 = sand.u32 %s102, 1
          %s238 = smul.addr %s237, 1024
          %s239 = scalar_lea.vmem [#allocation3], %s238
          %241 = vsyncadd %s236, 0
          %s242 = smul.addr %s19, 128
          %s243 = smul.addr %s242, 8
          %s244 = scalar_lea.hbm %s3, %s243
          %s245 = sshll.u32 %s244, 4
          %s246 = int_to_ptr.hbm [resolvable:$true] %s245
          %s247 = sshll.u32 %s239, 4
          %s248 = int_to_ptr.vmem [resolvable:$true] %s247
          %253 = dma.hbm_to_vmem [thread:$0]  %s246, 16384, %s248, %s236, 512, 512, 32
        $region32: #{stacked_lstm_forward.1} parent=19 // pred_fallthru
          _
        // Predicated region
        $region33: #{stacked_lstm_forward.1} parent=19 // pred_check
          %p254 = pneg %p138
        $region34: #{stacked_lstm_forward.1} parent=19 // pred_check_branch
          %256 = sbr.rel (%p254) target = $region36
        $region35: #{stacked_lstm_forward.1} parent=19 // pred_region
          %s257 = sand.u32 %s128, 1
          %s258 = scalar_lea.sflag [#allocation6], %s257
          %s259 = sand.u32 %s128, 1
          %s260 = smul.addr %s259, 4
          %s261 = scalar_lea.vmem [#allocation5], %s260
          %263 = vsyncadd %s258, 0
          %s264 = smul.addr %s19, 4
          %s265 = scalar_lea.hbm %s4, %s264
          %s267 = sshll.u32 %s265, 4
          %s268 = int_to_ptr.hbm [resolvable:$true] %s267
          %s269 = sshll.u32 %s261, 4
          %s270 = int_to_ptr.vmem [resolvable:$true] %s269
          %272 = dma.hbm_to_vmem [thread:$0]  %s268, 64, %s270, %s258
        $region36: #{stacked_lstm_forward.1} parent=19 // pred_fallthru
          _
      $region20: #{stacked_lstm_forward.1} parent=5 // pred_fallthru
        _
      %p273 = scmp.le.s32.totalorder 1, %s19
      %p274 = scmp.lt.s32.totalorder %s19, 4
      %p275 = pnand %p273, %p274
      %p276 = pneg %p275
      // Predicated region
      $region37: #{stacked_lstm_forward.1} parent=5 // pred_check
        _
      $region38: #{stacked_lstm_forward.1} parent=5 // pred_check_branch
        %278 = sbr.rel (%p275) target = $region40
      $region39: #{stacked_lstm_forward.1} parent=5 // pred_region
        %s279 = ssub.s32 %s19, 1
        %s280 = sand.u32 %s105, 1
        %s281 = scalar_lea.sflag [#allocation4], %s280
        %s282 = sand.u32 %s105, 1
        %s283 = smul.addr %s282, 1024
        %s284 = scalar_lea.vmem [#allocation3], %s283
        // Predicated region
        $region41: #{stacked_lstm_forward.1} parent=39 // pred_check
          %p285 = pneg %p118
        $region42: #{stacked_lstm_forward.1} parent=39 // pred_check_branch
          %287 = sbr.rel (%p285) target = $region44
        $region43: #{stacked_lstm_forward.1} parent=39 // pred_region
          %289 = dma.done %s281, 16384
        $region44: #{stacked_lstm_forward.1} parent=39 // pred_fallthru
          _
        %s290 = sand.u32 %s131, 1
        %s291 = scalar_lea.sflag [#allocation6], %s290
        %s292 = sand.u32 %s131, 1
        %s293 = smul.addr %s292, 4
        %s294 = scalar_lea.vmem [#allocation5], %s293
        // Predicated region
        $region45: #{stacked_lstm_forward.1} parent=39 // pred_check
          %p295 = pneg %p144
        $region46: #{stacked_lstm_forward.1} parent=39 // pred_check_branch
          %297 = sbr.rel (%p295) target = $region48
        $region47: #{stacked_lstm_forward.1} parent=39 // pred_region
          %299 = dma.done %s291, 64
        $region48: #{stacked_lstm_forward.1} parent=39 // pred_fallthru
          _
        %p300 = pneg %p40
        %p301 = pneg %p37
        %p302 = scmp.lt.s32.totalorder %s24, 2
        %s303 = scalar_select %p302, %s24, 2
        %s304 = smul.addr %s303, 8
        %s305 = scalar_lea.vmem %s1, %s304
        %p306 = pneg %p66
        %p307 = pneg %p63
        %p308 = scmp.lt.s32.totalorder %s24, 2
        %s309 = scalar_select %p308, %s24, 2
        %s310 = smul.addr %s309, 8
        %s311 = scalar_lea.vmem %s2, %s310
        %p312 = pneg %p92
        %p313 = pneg %p89
        %s314 = sand.u32 %s105, 1
        %s315 = scalar_lea.sflag [#allocation4], %s314
        %s316 = sand.u32 %s105, 1
        %s317 = smul.addr %s316, 1024
        %s318 = scalar_lea.vmem [#allocation3], %s317
        %p319 = pneg %p118
        %p320 = pneg %p115
        %s321 = sand.u32 %s131, 1
        %s322 = scalar_lea.sflag [#allocation6], %s321
        %s323 = sand.u32 %s131, 1
        %s324 = smul.addr %s323, 4
        %s325 = scalar_lea.vmem [#allocation5], %s324
        %p326 = pneg %p144
        %p327 = pneg %p141
        %p328 = pneg %p170
        %p329 = pneg %p167
        %p330 = scmp.lt.s32.totalorder %s24, 2
        %s331 = scalar_select %p330, %s24, 2
        %s332 = smul.addr %s331, 8
        %s333 = scalar_lea.vmem %s5, %s332
        %p334 = pneg %p196
        %p335 = pneg %p193
        %p336 = scmp.lt.s32.totalorder %s24, 2
        %s337 = scalar_select %p336, %s24, 2
        %s338 = smul.addr %s337, 8
        %s339 = scalar_lea.vmem %s6, %s338
        %p340 = scmp.lt.s32.totalorder %s24, 2
        %s341 = scalar_select %p340, %s24, 2
        %s342 = smul.addr %s341, 8
        %s343 = scalar_lea.vmem %s1, %s342
        %p344 = scmp.lt.s32.totalorder %s24, 2
        %s345 = scalar_select %p344, %s24, 2
        %s346 = smul.addr %s345, 8
        %s347 = scalar_lea.vmem %s2, %s346
        %p348 = scmp.lt.s32.totalorder %s24, 2
        %s349 = scalar_select %p348, %s24, 2
        %s350 = smul.addr %s349, 8
        %s351 = scalar_lea.vmem %s5, %s350
        %p352 = scmp.lt.s32.totalorder %s24, 2
        %s353 = scalar_select %p352, %s24, 2
        %s354 = smul.addr %s353, 8
        %s355 = scalar_lea.vmem %s6, %s354
        %p356 = scmp.eq.s32.totalorder %s24, 0
        // Predicated region
        $region49: #{stacked_lstm_forward.1} parent=39 // pred_check
          %p357 = pneg %p356
        $region50: #{stacked_lstm_forward.1} parent=39 // pred_check_branch
          %359 = sbr.rel (%p357) target = $region52
        $region51: #{stacked_lstm_forward.1} parent=39 // pred_region
          %v360 = vld [vmem:[%s0] sm:$0xff]
          %361 = vst [vmem:[#allocation2] sm:$0xff] %v360
        $region52: #{stacked_lstm_forward.1} parent=39 // pred_fallthru
          _
        %v362 = vld [vmem:[%s343] sm:$0xff]
        %363 = vst [vmem:[#allocation2 + $0x8] sm:$0xff] %v362
        %v364 = vld [vmem:[#allocation2] sm:$0xff]
        %v365 = vld [vmem:[#allocation2 + $0x8] sm:$0xff]
        %v366 = vld [vmem:[%s284] sm:$0xff]
        %v367 = vld [vmem:[%s284 + $0x8] sm:$0xff]
        %v368 = vld [vmem:[%s284 + $0x10] sm:$0xff]
        %v369 = vld [vmem:[%s284 + $0x18] sm:$0xff]
        %v370 = vld [vmem:[%s284 + $0x20] sm:$0xff]
        %v371 = vld [vmem:[%s284 + $0x28] sm:$0xff]
        %v372 = vld [vmem:[%s284 + $0x30] sm:$0xff]
        %v373 = vld [vmem:[%s284 + $0x38] sm:$0xff]
        %v374 = vld [vmem:[%s284 + $0x40] sm:$0xff]
        %v375 = vld [vmem:[%s284 + $0x48] sm:$0xff]
        %v376 = vld [vmem:[%s284 + $0x50] sm:$0xff]
        %v377 = vld [vmem:[%s284 + $0x58] sm:$0xff]
        %v378 = vld [vmem:[%s284 + $0x60] sm:$0xff]
        %v379 = vld [vmem:[%s284 + $0x68] sm:$0xff]
        %v380 = vld [vmem:[%s284 + $0x70] sm:$0xff]
        %v381 = vld [vmem:[%s284 + $0x78] sm:$0xff]
        %v382 = vld [vmem:[%s284 + $0x80] sm:$0xff]
        %v383 = vld [vmem:[%s284 + $0x88] sm:$0xff]
        %v384 = vld [vmem:[%s284 + $0x90] sm:$0xff]
        %v385 = vld [vmem:[%s284 + $0x98] sm:$0xff]
        %v386 = vld [vmem:[%s284 + $0xa0] sm:$0xff]
        %v387 = vld [vmem:[%s284 + $0xa8] sm:$0xff]
        %v388 = vld [vmem:[%s284 + $0xb0] sm:$0xff]
        %v389 = vld [vmem:[%s284 + $0xb8] sm:$0xff]
        %v390 = vld [vmem:[%s284 + $0xc0] sm:$0xff]
        %v391 = vld [vmem:[%s284 + $0xc8] sm:$0xff]
        %v392 = vld [vmem:[%s284 + $0xd0] sm:$0xff]
        %v393 = vld [vmem:[%s284 + $0xd8] sm:$0xff]
        %v394 = vld [vmem:[%s284 + $0xe0] sm:$0xff]
        %v395 = vld [vmem:[%s284 + $0xe8] sm:$0xff]
        %v396 = vld [vmem:[%s284 + $0xf0] sm:$0xff]
        %v397 = vld [vmem:[%s284 + $0xf8] sm:$0xff]
        %v398 = vld [vmem:[%s284 + $0x100] sm:$0xff]
        %v399 = vld [vmem:[%s284 + $0x108] sm:$0xff]
        %v400 = vld [vmem:[%s284 + $0x110] sm:$0xff]
        %v401 = vld [vmem:[%s284 + $0x118] sm:$0xff]
        %v402 = vld [vmem:[%s284 + $0x120] sm:$0xff]
        %v403 = vld [vmem:[%s284 + $0x128] sm:$0xff]
        %v404 = vld [vmem:[%s284 + $0x130] sm:$0xff]
        %v405 = vld [vmem:[%s284 + $0x138] sm:$0xff]
        %v406 = vld [vmem:[%s284 + $0x140] sm:$0xff]
        %v407 = vld [vmem:[%s284 + $0x148] sm:$0xff]
        %v408 = vld [vmem:[%s284 + $0x150] sm:$0xff]
        %v409 = vld [vmem:[%s284 + $0x158] sm:$0xff]
        %v410 = vld [vmem:[%s284 + $0x160] sm:$0xff]
        %v411 = vld [vmem:[%s284 + $0x168] sm:$0xff]
        %v412 = vld [vmem:[%s284 + $0x170] sm:$0xff]
        %v413 = vld [vmem:[%s284 + $0x178] sm:$0xff]
        %v414 = vld [vmem:[%s284 + $0x180] sm:$0xff]
        %v415 = vld [vmem:[%s284 + $0x188] sm:$0xff]
        %v416 = vld [vmem:[%s284 + $0x190] sm:$0xff]
        %v417 = vld [vmem:[%s284 + $0x198] sm:$0xff]
        %v418 = vld [vmem:[%s284 + $0x1a0] sm:$0xff]
        %v419 = vld [vmem:[%s284 + $0x1a8] sm:$0xff]
        %v420 = vld [vmem:[%s284 + $0x1b0] sm:$0xff]
        %v421 = vld [vmem:[%s284 + $0x1b8] sm:$0xff]
        %v422 = vld [vmem:[%s284 + $0x1c0] sm:$0xff]
        %v423 = vld [vmem:[%s284 + $0x1c8] sm:$0xff]
        %v424 = vld [vmem:[%s284 + $0x1d0] sm:$0xff]
        %v425 = vld [vmem:[%s284 + $0x1d8] sm:$0xff]
        %v426 = vld [vmem:[%s284 + $0x1e0] sm:$0xff]
        %v427 = vld [vmem:[%s284 + $0x1e8] sm:$0xff]
        %v428 = vld [vmem:[%s284 + $0x1f0] sm:$0xff]
        %v429 = vld [vmem:[%s284 + $0x1f8] sm:$0xff]
        %v430 = vld [vmem:[%s284 + $0x200] sm:$0xff]
        %v431 = vld [vmem:[%s284 + $0x208] sm:$0xff]
        %v432 = vld [vmem:[%s284 + $0x210] sm:$0xff]
        %v433 = vld [vmem:[%s284 + $0x218] sm:$0xff]
        %v434 = vld [vmem:[%s284 + $0x220] sm:$0xff]
        %v435 = vld [vmem:[%s284 + $0x228] sm:$0xff]
        %v436 = vld [vmem:[%s284 + $0x230] sm:$0xff]
        %v437 = vld [vmem:[%s284 + $0x238] sm:$0xff]
        %v438 = vld [vmem:[%s284 + $0x240] sm:$0xff]
        %v439 = vld [vmem:[%s284 + $0x248] sm:$0xff]
        %v440 = vld [vmem:[%s284 + $0x250] sm:$0xff]
        %v441 = vld [vmem:[%s284 + $0x258] sm:$0xff]
        %v442 = vld [vmem:[%s284 + $0x260] sm:$0xff]
        %v443 = vld [vmem:[%s284 + $0x268] sm:$0xff]
        %v444 = vld [vmem:[%s284 + $0x270] sm:$0xff]
        %v445 = vld [vmem:[%s284 + $0x278] sm:$0xff]
        %v446 = vld [vmem:[%s284 + $0x280] sm:$0xff]
        %v447 = vld [vmem:[%s284 + $0x288] sm:$0xff]
        %v448 = vld [vmem:[%s284 + $0x290] sm:$0xff]
        %v449 = vld [vmem:[%s284 + $0x298] sm:$0xff]
        %v450 = vld [vmem:[%s284 + $0x2a0] sm:$0xff]
        %v451 = vld [vmem:[%s284 + $0x2a8] sm:$0xff]
        %v452 = vld [vmem:[%s284 + $0x2b0] sm:$0xff]
        %v453 = vld [vmem:[%s284 + $0x2b8] sm:$0xff]
        %v454 = vld [vmem:[%s284 + $0x2c0] sm:$0xff]
        %v455 = vld [vmem:[%s284 + $0x2c8] sm:$0xff]
        %v456 = vld [vmem:[%s284 + $0x2d0] sm:$0xff]
        %v457 = vld [vmem:[%s284 + $0x2d8] sm:$0xff]
        %v458 = vld [vmem:[%s284 + $0x2e0] sm:$0xff]
        %v459 = vld [vmem:[%s284 + $0x2e8] sm:$0xff]
        %v460 = vld [vmem:[%s284 + $0x2f0] sm:$0xff]
        %v461 = vld [vmem:[%s284 + $0x2f8] sm:$0xff]
        %v462 = vld [vmem:[%s284 + $0x300] sm:$0xff]
        %v463 = vld [vmem:[%s284 + $0x308] sm:$0xff]
        %v464 = vld [vmem:[%s284 + $0x310] sm:$0xff]
        %v465 = vld [vmem:[%s284 + $0x318] sm:$0xff]
        %v466 = vld [vmem:[%s284 + $0x320] sm:$0xff]
        %v467 = vld [vmem:[%s284 + $0x328] sm:$0xff]
        %v468 = vld [vmem:[%s284 + $0x330] sm:$0xff]
        %v469 = vld [vmem:[%s284 + $0x338] sm:$0xff]
        %v470 = vld [vmem:[%s284 + $0x340] sm:$0xff]
        %v471 = vld [vmem:[%s284 + $0x348] sm:$0xff]
        %v472 = vld [vmem:[%s284 + $0x350] sm:$0xff]
        %v473 = vld [vmem:[%s284 + $0x358] sm:$0xff]
        %v474 = vld [vmem:[%s284 + $0x360] sm:$0xff]
        %v475 = vld [vmem:[%s284 + $0x368] sm:$0xff]
        %v476 = vld [vmem:[%s284 + $0x370] sm:$0xff]
        %v477 = vld [vmem:[%s284 + $0x378] sm:$0xff]
        %v478 = vld [vmem:[%s284 + $0x380] sm:$0xff]
        %v479 = vld [vmem:[%s284 + $0x388] sm:$0xff]
        %v480 = vld [vmem:[%s284 + $0x390] sm:$0xff]
        %v481 = vld [vmem:[%s284 + $0x398] sm:$0xff]
        %v482 = vld [vmem:[%s284 + $0x3a0] sm:$0xff]
        %v483 = vld [vmem:[%s284 + $0x3a8] sm:$0xff]
        %v484 = vld [vmem:[%s284 + $0x3b0] sm:$0xff]
        %v485 = vld [vmem:[%s284 + $0x3b8] sm:$0xff]
        %v486 = vld [vmem:[%s284 + $0x3c0] sm:$0xff]
        %v487 = vld [vmem:[%s284 + $0x3c8] sm:$0xff]
        %v488 = vld [vmem:[%s284 + $0x3d0] sm:$0xff]
        %v489 = vld [vmem:[%s284 + $0x3d8] sm:$0xff]
        %v490 = vld [vmem:[%s284 + $0x3e0] sm:$0xff]
        %v491 = vld [vmem:[%s284 + $0x3e8] sm:$0xff]
        %v492 = vld [vmem:[%s284 + $0x3f0] sm:$0xff]
        %v493 = vld [vmem:[%s284 + $0x3f8] sm:$0xff]
        %v494 = vld [vmem:[%s294] sm:$0xf]
        %v496 = vperm.slane %v494, 0
        %v497 = vperm.slane %v494, 1
        %v498 = vperm.slane %v494, 2
        %v499 = vperm.slane %v494, 3
        %504 = vmatpush.msra.mxu0 %v426
        %505 = vmatpush.msra.mxu0 %v422
        %506 = vmatpush.msra.mxu0 %v418
        %507 = vmatpush.msra.mxu0 %v414
        %508 = vmatpush.msra.mxu0 %v410
        %509 = vmatpush.msra.mxu0 %v406
        %510 = vmatpush.msra.mxu0 %v402
        %511 = vmatpush.msra.mxu0 %v398
        %512 = vmatpush.msra.mxu0 %v394
        %513 = vmatpush.msra.mxu0 %v390
        %514 = vmatpush.msra.mxu0 %v386
        %515 = vmatpush.msra.mxu0 %v382
        %516 = vmatpush.msra.mxu0 %v378
        %517 = vmatpush.msra.mxu0 %v374
        %518 = vmatpush.msra.mxu0 %v370
        %519 = vmatpush.msra.mxu0 %v366
        %520 = vmatmul.f32.gmra.mxu0 %v364
        %v521 = vpop.f32.mrf.mxu0
        %v522 = vadd.f32 %v496, %v521
        %523 = vdwg.mxu0
        %524 = vmatpush.msra.mxu0 %v490
        %525 = vmatpush.msra.mxu0 %v486
        %526 = vmatpush.msra.mxu0 %v482
        %527 = vmatpush.msra.mxu0 %v478
        %528 = vmatpush.msra.mxu0 %v474
        %529 = vmatpush.msra.mxu0 %v470
        %530 = vmatpush.msra.mxu0 %v466
        %531 = vmatpush.msra.mxu0 %v462
        %532 = vmatpush.msra.mxu0 %v458
        %533 = vmatpush.msra.mxu0 %v454
        %534 = vmatpush.msra.mxu0 %v450
        %535 = vmatpush.msra.mxu0 %v446
        %536 = vmatpush.msra.mxu0 %v442
        %537 = vmatpush.msra.mxu0 %v438
        %538 = vmatpush.msra.mxu0 %v434
        %539 = vmatpush.msra.mxu0 %v430
        %540 = vmatmul.f32.gmra.mxu0 %v365
        %v541 = vpop.f32.mrf.mxu0
        %v542 = vadd.f32 %v522, %v541
        %543 = vdwg.mxu0
        %544 = vmatpush.msra.mxu0 %v427
        %545 = vmatpush.msra.mxu0 %v423
        %546 = vmatpush.msra.mxu0 %v419
        %547 = vmatpush.msra.mxu0 %v415
        %548 = vmatpush.msra.mxu0 %v411
        %549 = vmatpush.msra.mxu0 %v407
        %550 = vmatpush.msra.mxu0 %v403
        %551 = vmatpush.msra.mxu0 %v399
        %552 = vmatpush.msra.mxu0 %v395
        %553 = vmatpush.msra.mxu0 %v391
        %554 = vmatpush.msra.mxu0 %v387
        %555 = vmatpush.msra.mxu0 %v383
        %556 = vmatpush.msra.mxu0 %v379
        %557 = vmatpush.msra.mxu0 %v375
        %558 = vmatpush.msra.mxu0 %v371
        %559 = vmatpush.msra.mxu0 %v367
        %560 = vmatmul.f32.gmra.mxu0 %v364
        %v561 = vpop.f32.mrf.mxu0
        %v562 = vadd.f32 %v497, %v561
        %563 = vdwg.mxu0
        %564 = vmatpush.msra.mxu0 %v491
        %565 = vmatpush.msra.mxu0 %v487
        %566 = vmatpush.msra.mxu0 %v483
        %567 = vmatpush.msra.mxu0 %v479
        %568 = vmatpush.msra.mxu0 %v475
        %569 = vmatpush.msra.mxu0 %v471
        %570 = vmatpush.msra.mxu0 %v467
        %571 = vmatpush.msra.mxu0 %v463
        %572 = vmatpush.msra.mxu0 %v459
        %573 = vmatpush.msra.mxu0 %v455
        %574 = vmatpush.msra.mxu0 %v451
        %575 = vmatpush.msra.mxu0 %v447
        %576 = vmatpush.msra.mxu0 %v443
        %577 = vmatpush.msra.mxu0 %v439
        %578 = vmatpush.msra.mxu0 %v435
        %579 = vmatpush.msra.mxu0 %v431
        %580 = vmatmul.f32.gmra.mxu0 %v365
        %v581 = vpop.f32.mrf.mxu0
        %v582 = vadd.f32 %v562, %v581
        %583 = vdwg.mxu0
        %584 = vmatpush.msra.mxu0 %v428
        %585 = vmatpush.msra.mxu0 %v424
        %586 = vmatpush.msra.mxu0 %v420
        %587 = vmatpush.msra.mxu0 %v416
        %588 = vmatpush.msra.mxu0 %v412
        %589 = vmatpush.msra.mxu0 %v408
        %590 = vmatpush.msra.mxu0 %v404
        %591 = vmatpush.msra.mxu0 %v400
        %592 = vmatpush.msra.mxu0 %v396
        %593 = vmatpush.msra.mxu0 %v392
        %594 = vmatpush.msra.mxu0 %v388
        %595 = vmatpush.msra.mxu0 %v384
        %596 = vmatpush.msra.mxu0 %v380
        %597 = vmatpush.msra.mxu0 %v376
        %598 = vmatpush.msra.mxu0 %v372
        %599 = vmatpush.msra.mxu0 %v368
        %600 = vmatmul.f32.gmra.mxu0 %v364
        %v601 = vpop.f32.mrf.mxu0
        %v602 = vadd.f32 %v498, %v601
        %603 = vdwg.mxu0
        %604 = vmatpush.msra.mxu0 %v492
        %605 = vmatpush.msra.mxu0 %v488
        %606 = vmatpush.msra.mxu0 %v484
        %607 = vmatpush.msra.mxu0 %v480
        %608 = vmatpush.msra.mxu0 %v476
        %609 = vmatpush.msra.mxu0 %v472
        %610 = vmatpush.msra.mxu0 %v468
        %611 = vmatpush.msra.mxu0 %v464
        %612 = vmatpush.msra.mxu0 %v460
        %613 = vmatpush.msra.mxu0 %v456
        %614 = vmatpush.msra.mxu0 %v452
        %615 = vmatpush.msra.mxu0 %v448
        %616 = vmatpush.msra.mxu0 %v444
        %617 = vmatpush.msra.mxu0 %v440
        %618 = vmatpush.msra.mxu0 %v436
        %619 = vmatpush.msra.mxu0 %v432
        %620 = vmatmul.f32.gmra.mxu0 %v365
        %v621 = vpop.f32.mrf.mxu0
        %v622 = vadd.f32 %v602, %v621
        %623 = vdwg.mxu0
        %624 = vmatpush.msra.mxu0 %v429
        %625 = vmatpush.msra.mxu0 %v425
        %626 = vmatpush.msra.mxu0 %v421
        %627 = vmatpush.msra.mxu0 %v417
        %628 = vmatpush.msra.mxu0 %v413
        %629 = vmatpush.msra.mxu0 %v409
        %630 = vmatpush.msra.mxu0 %v405
        %631 = vmatpush.msra.mxu0 %v401
        %632 = vmatpush.msra.mxu0 %v397
        %633 = vmatpush.msra.mxu0 %v393
        %634 = vmatpush.msra.mxu0 %v389
        %635 = vmatpush.msra.mxu0 %v385
        %636 = vmatpush.msra.mxu0 %v381
        %637 = vmatpush.msra.mxu0 %v377
        %638 = vmatpush.msra.mxu0 %v373
        %639 = vmatpush.msra.mxu0 %v369
        %640 = vmatmul.f32.gmra.mxu0 %v364
        %v641 = vpop.f32.mrf.mxu0
        %v642 = vadd.f32 %v499, %v641
        %643 = vdwg.mxu0
        %644 = vmatpush.msra.mxu0 %v493
        %645 = vmatpush.msra.mxu0 %v489
        %646 = vmatpush.msra.mxu0 %v485
        %647 = vmatpush.msra.mxu0 %v481
        %648 = vmatpush.msra.mxu0 %v477
        %649 = vmatpush.msra.mxu0 %v473
        %650 = vmatpush.msra.mxu0 %v469
        %651 = vmatpush.msra.mxu0 %v465
        %652 = vmatpush.msra.mxu0 %v461
        %653 = vmatpush.msra.mxu0 %v457
        %654 = vmatpush.msra.mxu0 %v453
        %655 = vmatpush.msra.mxu0 %v449
        %656 = vmatpush.msra.mxu0 %v445
        %657 = vmatpush.msra.mxu0 %v441
        %658 = vmatpush.msra.mxu0 %v437
        %659 = vmatpush.msra.mxu0 %v433
        %660 = vmatmul.f32.gmra.mxu0 %v365
        %v661 = vpop.f32.mrf.mxu0
        %v662 = vadd.f32 %v642, %v661
        %663 = vdwg.mxu0
        %v664 = vxor.u32 %v542, 2147483648
        %v665 = vmul.f32 %v664, 1.442695
        %v666 = vpow.pop %v665
        %v667 = vadd.f32 %v666, 1.0
        %v668 = vrcp.pop %v667
        %v669 = vmul.f32 %v667, %v668
        %v670 = vsub.f32 1.0, %v669
        %v671 = vmul.f32 %v668, %v670
        %v672 = vadd.f32 %v668, %v671
        %vm673 = vweird.f32 %v667
        %vm674 = vweird.f32 %v668
        %vm675 = vmor %vm673, %vm674
        %v676 = vsel %vm675, %v668, %v672
        %v677 = vand.u32 2147483647, %v667
        %vm678 = vcmp.eq.f32.partialorder %v677, 8.507059e+37
        %v679 = vand.u32 %v667, 2147483648
        %v680 = vor.u32 1.1754944e-38, %v679
        %v681 = vsel %vm678, %v680, %v676
        %v682 = vmul.f32 1.0, %v681
        %v683 = vxor.u32 %v582, 2147483648
        %v684 = vmul.f32 %v683, 1.442695
        %v685 = vpow.pop %v684
        %v686 = vadd.f32 %v685, 1.0
        %v687 = vrcp.pop %v686
        %v688 = vmul.f32 %v686, %v687
        %v689 = vsub.f32 1.0, %v688
        %v690 = vmul.f32 %v687, %v689
        %v691 = vadd.f32 %v687, %v690
        %vm692 = vweird.f32 %v686
        %vm693 = vweird.f32 %v687
        %vm694 = vmor %vm692, %vm693
        %v695 = vsel %vm694, %v687, %v691
        %v696 = vand.u32 2147483647, %v686
        %vm697 = vcmp.eq.f32.partialorder %v696, 8.507059e+37
        %v698 = vand.u32 %v686, 2147483648
        %v699 = vor.u32 1.1754944e-38, %v698
        %v700 = vsel %vm697, %v699, %v695
        %v701 = vmul.f32 1.0, %v700
        %v702 = vtanh.pop %v622
        %v703 = vxor.u32 %v662, 2147483648
        %v704 = vmul.f32 %v703, 1.442695
        %v705 = vpow.pop %v704
        %v706 = vadd.f32 %v705, 1.0
        %v707 = vrcp.pop %v706
        %v708 = vmul.f32 %v706, %v707
        %v709 = vsub.f32 1.0, %v708
        %v710 = vmul.f32 %v707, %v709
        %v711 = vadd.f32 %v707, %v710
        %vm712 = vweird.f32 %v706
        %vm713 = vweird.f32 %v707
        %vm714 = vmor %vm712, %vm713
        %v715 = vsel %vm714, %v707, %v711
        %v716 = vand.u32 2147483647, %v706
        %vm717 = vcmp.eq.f32.partialorder %v716, 8.507059e+37
        %v718 = vand.u32 %v706, 2147483648
        %v719 = vor.u32 1.1754944e-38, %v718
        %v720 = vsel %vm717, %v719, %v715
        %v721 = vmul.f32 1.0, %v720
        %v722 = vld [vmem:[%s347] sm:$0xff]
        %v723 = vmul.f32 %v701, %v722
        %v724 = vmul.f32 %v682, %v702
        %v725 = vadd.f32 %v723, %v724
        %v726 = vtanh.pop %v725
        %v727 = vmul.f32 %v721, %v726
        %728 = vst [vmem:[%s351] sm:$0xff] %v727
        %729 = vst [vmem:[%s355] sm:$0xff] %v725
        %s730 = sadd.s32 %s24, 1
        %p731 = scmp.lt.s32.totalorder %s730, 3
        // Predicated region
        $region53: #{stacked_lstm_forward.1} parent=39 // pred_check
          %p732 = pneg %p731
        $region54: #{stacked_lstm_forward.1} parent=39 // pred_check_branch
          %734 = sbr.rel (%p732) target = $region56
        $region55: #{stacked_lstm_forward.1} parent=39 // pred_region
          %735 = vst [vmem:[#allocation2] sm:$0xff] %v727
        $region56: #{stacked_lstm_forward.1} parent=39 // pred_fallthru
          _
        %p736 = scmp.lt.s32.totalorder %s24, 2
        %s737 = scalar_select %p736, %s24, 2
        %s738 = smul.addr %s737, 8
        %s739 = scalar_lea.vmem %s5, %s738
        %p740 = scmp.lt.s32.totalorder %s24, 2
        %s741 = scalar_select %p740, %s24, 2
        %s742 = smul.addr %s741, 8
        %s743 = scalar_lea.vmem %s6, %s742
        // Predicated region
        $region57: #{stacked_lstm_forward.1} parent=39 // pred_check
          %p744 = pneg %p167
        $region58: #{stacked_lstm_forward.1} parent=39 // pred_check_branch
          %746 = sbr.rel (%p744) target = $region60
        $region59: #{stacked_lstm_forward.1} parent=39 // pred_region
          _
        $region60: #{stacked_lstm_forward.1} parent=39 // pred_fallthru
          _
        // Predicated region
        $region61: #{stacked_lstm_forward.1} parent=39 // pred_check
          %p747 = pneg %p193
        $region62: #{stacked_lstm_forward.1} parent=39 // pred_check_branch
          %749 = sbr.rel (%p747) target = $region64
        $region63: #{stacked_lstm_forward.1} parent=39 // pred_region
          _
        $region64: #{stacked_lstm_forward.1} parent=39 // pred_fallthru
          _
      $region40: #{stacked_lstm_forward.1} parent=5 // pred_fallthru
        _
      %p750 = scmp.le.s32.totalorder 2, %s19
      // Predicated region
      $region65: #{stacked_lstm_forward.1} parent=5 // pred_check
        %p751 = pneg %p750
      $region66: #{stacked_lstm_forward.1} parent=5 // pred_check_branch
        %753 = sbr.rel (%p751) target = $region68
      $region67: #{stacked_lstm_forward.1} parent=5 // pred_region
        %s754 = ssub.s32 %s19, 2
        // Predicated region
        $region69: #{stacked_lstm_forward.1} parent=67 // pred_check
          %p755 = pneg %p173
        $region70: #{stacked_lstm_forward.1} parent=67 // pred_check_branch
          %757 = sbr.rel (%p755) target = $region72
        $region71: #{stacked_lstm_forward.1} parent=67 // pred_region
          %p758 = scmp.lt.s32.totalorder %s25, 2
          %s759 = scalar_select %p758, %s25, 2
          %s760 = smul.addr %s759, 8
          %s761 = scalar_lea.vmem %s5, %s760
        $region72: #{stacked_lstm_forward.1} parent=67 // pred_fallthru
          _
        // Predicated region
        $region73: #{stacked_lstm_forward.1} parent=67 // pred_check
          %p762 = pneg %p199
        $region74: #{stacked_lstm_forward.1} parent=67 // pred_check_branch
          %764 = sbr.rel (%p762) target = $region76
        $region75: #{stacked_lstm_forward.1} parent=67 // pred_region
          %p765 = scmp.lt.s32.totalorder %s25, 2
          %s766 = scalar_select %p765, %s25, 2
          %s767 = smul.addr %s766, 8
          %s768 = scalar_lea.vmem %s6, %s767
        $region76: #{stacked_lstm_forward.1} parent=67 // pred_fallthru
          _
      $region68: #{stacked_lstm_forward.1} parent=5 // pred_fallthru
        _
    $region6: #{stacked_lstm_forward.1} parent=1 // loop_footer
      %s23 = sadd.s32 1, %s19
    $region7: #{stacked_lstm_forward.1} parent=1 // loop_footer_branch
      %18 = sbr.rel target = $region3
    $region8: #{stacked_lstm_forward.1} parent=1 // loop_exit
      _
    %769 = vsyncpa [#allocation4], 1
    %s770 = scalar_lea.sflag [#allocation4], 1
    %771 = vsyncpa %s770, 1
    %772 = vsyncpa [#allocation6], 1
    %s773 = scalar_lea.sflag [#allocation6], 1
    %774 = vsyncpa %s773, 1

</llo_original>
